<compile_context>
chip_gen: v7x
topology: tpu7x:2x2x1
jax: 0.10.0
libtpu: 0.0.40
codegen_flags: <defaults>
</compile_context>

<pallas_src>
import functools
import math

import jax
import jax.numpy as jnp
from jax.experimental import pallas as pl
from jax.experimental.pallas import tpu as pltpu


# ----------------------------------------------------------------- helpers


def _pick_tile(dim, target, base):
    """Largest tile <= target that divides dim and is a multiple of base.

    Falls back to the full dim (always a legal BlockSpec block size)."""
    if dim <= target:
        return dim
    t = (target // base) * base
    while t >= base:
        if dim % t == 0:
            return t
        t -= base
    return dim


# ------------------------------------------------------------------ dense


def _dense_kernel(x_ref, w_ref, b_ref, o_ref, acc_ref, *, act):
    @pl.when(pl.program_id(2) == 0)
    def _init():
        acc_ref[...] = jnp.zeros_like(acc_ref)

    acc_ref[...] += jnp.dot(x_ref[...], w_ref[...],
                            preferred_element_type=jnp.float32)

    @pl.when(pl.program_id(2) == pl.num_programs(2) - 1)
    def _finalize():
        y = acc_ref[...] + b_ref[...]
        if act == "gelu":
            # TODO(synk): HF BERT uses erf-GELU; tanh approximation is used
            # here (EUP-friendly, esp. on v5e) — small numerical difference.
            c = math.sqrt(2.0 / math.pi)
            y = 0.5 * y * (1.0 + jnp.tanh(c * (y + 0.044715 * y * y * y)))
        elif act == "tanh":
            y = jnp.tanh(y)
        o_ref[...] = y.astype(o_ref.dtype)


def dense(x, w, b, act="none", out_dtype=jnp.bfloat16,
          tm_t=256, tn_t=256, tk_t=512):
    """y = act(x @ w + b).  x:(M,K) bf16, w:(K,N) bf16, b:(N,) f32."""
    M, K = x.shape
    K2, N = w.shape
    assert K == K2
    tm = _pick_tile(M, tm_t, 16)
    tn = _pick_tile(N, tn_t, 128)
    tk = _pick_tile(K, tk_t, 128)
    grid = (M // tm, N // tn, K // tk)
    return pl.pallas_call(
        functools.partial(_dense_kernel, act=act),
        out_shape=jax.ShapeDtypeStruct((M, N), out_dtype),
        grid=grid,
        in_specs=[
            pl.BlockSpec((tm, tk), lambda i, j, k: (i, k)),
            pl.BlockSpec((tk, tn), lambda i, j, k: (k, j)),
            pl.BlockSpec((1, tn), lambda i, j, k: (0, j)),
        ],
        out_specs=pl.BlockSpec((tm, tn), lambda i, j, k: (i, j)),
        scratch_shapes=[pltpu.VMEM((tm, tn), jnp.float32)],
        compiler_params=pltpu.CompilerParams(
            dimension_semantics=("parallel", "parallel", "arbitrary")),
    )(x, w, b.reshape(1, N).astype(jnp.float32))


# ------------------------------------------- dense + residual + LayerNorm


def _dense_res_ln_kernel(x_ref, w_ref, b_ref, r_ref, g_ref, bb_ref,
                         o_ref, acc_ref, *, eps):
    @pl.when(pl.program_id(1) == 0)
    def _init():
        acc_ref[...] = jnp.zeros_like(acc_ref)

    acc_ref[...] += jnp.dot(x_ref[...], w_ref[...],
                            preferred_element_type=jnp.float32)

    @pl.when(pl.program_id(1) == pl.num_programs(1) - 1)
    def _finalize():
        y = acc_ref[...] + b_ref[...] + r_ref[...].astype(jnp.float32)
        mu = jnp.mean(y, axis=-1, keepdims=True)
        yc = y - mu
        var = jnp.mean(yc * yc, axis=-1, keepdims=True)
        inv = jax.lax.rsqrt(var + eps)
        o_ref[...] = (yc * inv * g_ref[...] + bb_ref[...]).astype(o_ref.dtype)


def dense_residual_ln(x, w, b, residual, gamma, beta, *, eps=1e-12,
                      out_dtype=jnp.bfloat16, tm_t=256, tk_t=512):
    """LayerNorm(x @ w + b + residual) with the full output row (N) per tile
    so the LN reduction can be fused into the matmul epilogue."""
    M, K = x.shape
    K2, N = w.shape
    assert K == K2 and residual.shape == (M, N)
    tm = _pick_tile(M, tm_t, 16)
    tk = _pick_tile(K, tk_t, 128)
    grid = (M // tm, K // tk)
    return pl.pallas_call(
        functools.partial(_dense_res_ln_kernel, eps=eps),
        out_shape=jax.ShapeDtypeStruct((M, N), out_dtype),
        grid=grid,
        in_specs=[
            pl.BlockSpec((tm, tk), lambda i, k: (i, k)),
            pl.BlockSpec((tk, N), lambda i, k: (k, 0)),
            pl.BlockSpec((1, N), lambda i, k: (0, 0)),
            pl.BlockSpec((tm, N), lambda i, k: (i, 0)),
            pl.BlockSpec((1, N), lambda i, k: (0, 0)),
            pl.BlockSpec((1, N), lambda i, k: (0, 0)),
        ],
        out_specs=pl.BlockSpec((tm, N), lambda i, k: (i, 0)),
        scratch_shapes=[pltpu.VMEM((tm, N), jnp.float32)],
        compiler_params=pltpu.CompilerParams(
            dimension_semantics=("parallel", "arbitrary")),
    )(x, w, b.reshape(1, N).astype(jnp.float32), residual,
      gamma.reshape(1, N).astype(jnp.float32),
      beta.reshape(1, N).astype(jnp.float32))


# -------------------------------------------------- standalone LayerNorm


def _ln_kernel(x_ref, g_ref, b_ref, o_ref, *, eps):
    x = x_ref[...].astype(jnp.float32)
    mu = jnp.mean(x, axis=-1, keepdims=True)
    xc = x - mu
    var = jnp.mean(xc * xc, axis=-1, keepdims=True)
    inv = jax.lax.rsqrt(var + eps)
    o_ref[...] = (xc * inv * g_ref[...] + b_ref[...]).astype(o_ref.dtype)


def layer_norm(x, gamma, beta, *, eps=1e-12, out_dtype=jnp.bfloat16, tm_t=256):
    M, H = x.shape
    tm = _pick_tile(M, tm_t, 16)
    return pl.pallas_call(
        functools.partial(_ln_kernel, eps=eps),
        out_shape=jax.ShapeDtypeStruct((M, H), out_dtype),
        grid=(M // tm,),
        in_specs=[
            pl.BlockSpec((tm, H), lambda i: (i, 0)),
            pl.BlockSpec((1, H), lambda i: (0, 0)),
            pl.BlockSpec((1, H), lambda i: (0, 0)),
        ],
        out_specs=pl.BlockSpec((tm, H), lambda i: (i, 0)),
        compiler_params=pltpu.CompilerParams(
            dimension_semantics=("parallel",)),
    )(x, gamma.reshape(1, H).astype(jnp.float32),
      beta.reshape(1, H).astype(jnp.float32))


# -------------------------------------------------------------- attention


def _attn_kernel(qkv_ref, o_ref, *, heads, dh, scale):
    x = qkv_ref[0]                              # (S, 3H) bf16, one batch
    H = heads * dh
    outs = []
    for h in range(heads):                      # static unroll over heads
        q = x[:, h * dh:(h + 1) * dh]
        k = x[:, H + h * dh:H + (h + 1) * dh]
        v = x[:, 2 * H + h * dh:2 * H + (h + 1) * dh]
        # contract last dims directly -> no explicit k.T transpose
        s = jax.lax.dot_general(q, k, (((1,), (1,)), ((), ())),
                                preferred_element_type=jnp.float32) * scale
        m = jnp.max(s, axis=-1, keepdims=True)
        p = jnp.exp(s - m)
        denom = jnp.sum(p, axis=-1, keepdims=True)
        p = p * pl.reciprocal(denom, approx=True)
        outs.append(jnp.dot(p.astype(v.dtype), v,
                            preferred_element_type=jnp.float32))
    o_ref[0] = jnp.concatenate(outs, axis=-1).astype(o_ref.dtype)


def attention(qkv, *, heads):
    """qkv: (B, S, 3H) fused projections -> (B, S, H) attention context."""
    # TODO(synk): no attention_mask — original path pads variable-length text
    #             and masks padding tokens; fixed-length ids assumed here.
    B, S, threeH = qkv.shape
    H = threeH // 3
    dh = H // heads
    scale = 1.0 / math.sqrt(dh)
    return pl.pallas_call(
        functools.partial(_attn_kernel, heads=heads, dh=dh, scale=scale),
        out_shape=jax.ShapeDtypeStruct((B, S, H), qkv.dtype),
        grid=(B,),
        in_specs=[pl.BlockSpec((1, S, threeH), lambda b: (b, 0, 0))],
        out_specs=pl.BlockSpec((1, S, H), lambda b: (b, 0, 0)),
        compiler_params=pltpu.CompilerParams(
            dimension_semantics=("parallel",)),
    )(qkv)


# --------------------------------------------- pooler + classifier (fused)


def _head_kernel(x_ref, wp_ref, bp_ref, wc_ref, bc_ref, o_ref):
    pooled = jnp.tanh(
        jnp.dot(x_ref[...], wp_ref[...], preferred_element_type=jnp.float32)
        + bp_ref[...])
    logits = jnp.dot(pooled.astype(wc_ref.dtype), wc_ref[...],
                     preferred_element_type=jnp.float32) + bc_ref[...]
    o_ref[...] = logits


def pooler_classifier(cls_tok, wp, bp, wc_pad, bc_pad):
    """pooled = tanh(cls @ Wp + bp); logits_pad = pooled @ Wc_pad + bc_pad."""
    B, H = cls_tok.shape
    Np = wc_pad.shape[1]
    return pl.pallas_call(
        _head_kernel,
        out_shape=jax.ShapeDtypeStruct((B, Np), jnp.float32),
        in_specs=[
            pl.BlockSpec((B, H), lambda: (0, 0)),
            pl.BlockSpec((H, H), lambda: (0, 0)),
            pl.BlockSpec((1, H), lambda: (0, 0)),
            pl.BlockSpec((H, Np), lambda: (0, 0)),
            pl.BlockSpec((1, Np), lambda: (0, 0)),
        ],
        out_specs=pl.BlockSpec((B, Np), lambda: (0, 0)),
    )(cls_tok, wp, bp.reshape(1, H).astype(jnp.float32),
      wc_pad, bc_pad.reshape(1, Np).astype(jnp.float32))


# ------------------------------------------------------------- parameters


def init_params(key, *, vocab, hidden, heads, inter, layers, classes, max_pos,
                cls_pad=128):
    std = 0.02

    def nrm(k, shape, dtype):
        return (std * jax.random.normal(k, shape, dtype=jnp.float32)).astype(dtype)

    keys = iter(jax.random.split(key, 8 + 4 * layers))
    p = {
        "word_emb": nrm(next(keys), (vocab, hidden), jnp.float32),
        "pos_emb": nrm(next(keys), (max_pos, hidden), jnp.float32),
        "type_emb": nrm(next(keys), (2, hidden), jnp.float32),
        "emb_ln_g": jnp.ones((hidden,), jnp.float32),
        "emb_ln_b": jnp.zeros((hidden,), jnp.float32),
        "pooler_w": nrm(next(keys), (hidden, hidden), jnp.bfloat16),
        "pooler_b": jnp.zeros((hidden,), jnp.float32),
        "layers": [],
    }
    # Classifier (nn.Linear(hidden, 2)) — zero-padded to a lane-dense width.
    cls_w = nrm(next(keys), (hidden, classes), jnp.float32)
    p["cls_w_pad"] = jnp.pad(cls_w, ((0, 0), (0, cls_pad - classes))).astype(jnp.bfloat16)
    p["cls_b_pad"] = jnp.zeros((cls_pad,), jnp.float32)
    for _ in range(layers):
        lp = {
            # fused Q|K|V projection weights (head-interleaved within each H)
            "w_qkv": nrm(next(keys), (hidden, 3 * hidden), jnp.bfloat16),
            "b_qkv": jnp.zeros((3 * hidden,), jnp.float32),
            "wo": nrm(next(keys), (hidden, hidden), jnp.bfloat16),
            "bo": jnp.zeros((hidden,), jnp.float32),
            "ln1_g": jnp.ones((hidden,), jnp.float32),
            "ln1_b": jnp.zeros((hidden,), jnp.float32),
            "wi": nrm(next(keys), (hidden, inter), jnp.bfloat16),
            "bi": jnp.zeros((inter,), jnp.float32),
            "wd": nrm(next(keys), (inter, hidden), jnp.bfloat16),
            "bd": jnp.zeros((hidden,), jnp.float32),
            "ln2_g": jnp.ones((hidden,), jnp.float32),
            "ln2_b": jnp.zeros((hidden,), jnp.float32),
        }
        p["layers"].append(lp)
    return p


# --------------------------------------------------------------- forward


def bert_net_forward(params, token_ids, *, hidden, heads, classes):
    B, S = token_ids.shape
    H = hidden

    # Embedding gather + sum is glue and stays in plain JAX.
    # TODO(synk): only segment-0 token-type embeddings are added.
    x = (params["word_emb"][token_ids]
         + params["pos_emb"][:S][None, :, :]
         + params["type_emb"][0][None, None, :])             # (B, S, H) f32
    x = layer_norm(x.reshape(B * S, H), params["emb_ln_g"], params["emb_ln_b"])

    for lp in params["layers"]:
        # fused QKV projection, attention, output proj + residual + LN (fused)
        qkv = dense(x, lp["w_qkv"], lp["b_qkv"])              # (B*S, 3H) bf16
        ctx = attention(qkv.reshape(B, S, 3 * H), heads=heads).reshape(B * S, H)
        x = dense_residual_ln(ctx, lp["wo"], lp["bo"], x, lp["ln1_g"], lp["ln1_b"])
        # FFN: up-proj + GELU (fused), down-proj + residual + LN (fused)
        h = dense(x, lp["wi"], lp["bi"], act="gelu")          # (B*S, inter) bf16
        x = dense_residual_ln(h, lp["wd"], lp["bd"], x, lp["ln2_g"], lp["ln2_b"])

    # Pooler + classifier fused in one kernel over the [CLS] token.
    cls_tok = x.reshape(B, S, H)[:, 0, :]                     # (B, H) bf16
    logits_pad = pooler_classifier(cls_tok, params["pooler_w"], params["pooler_b"],
                                   params["cls_w_pad"], params["cls_b_pad"])
    return logits_pad[:, :classes]


# ------------------------------------------------------------------ main

if __name__ == "__main__":
    B, S = 2, 8
    cfg = dict(vocab=30, hidden=32, heads=4, inter=64, layers=2, classes=2, max_pos=16)

    key = jax.random.PRNGKey(0)
    kp, kt = jax.random.split(key)
    params = init_params(kp, **cfg)
    token_ids = jax.random.randint(kt, (B, S), 0, cfg["vocab"], dtype=jnp.int32)

    logits = bert_net_forward(params, token_ids, hidden=cfg["hidden"],
                              heads=cfg["heads"], classes=cfg["classes"])
    logits = jax.block_until_ready(logits)

    assert logits.shape == (B, cfg["classes"]), logits.shape
    assert bool(jnp.all(jnp.isfinite(logits.astype(jnp.float32))))
    print("KERNEL_OK")
</pallas_src>

<mosaic_0001>
module attributes {stable_mosaic.version = 11 : i64} {
  func.func @_ln_kernel(%arg0: i32, %arg1: memref<16x32xf32, #tpu.memory_space<vmem>>, %arg2: memref<1x32xf32, #tpu.memory_space<vmem>>, %arg3: memref<1x32xf32, #tpu.memory_space<vmem>>, %arg4: memref<16x32xbf16, #tpu.memory_space<vmem>>) attributes {dimension_semantics = [#tpu.dimension_semantics<parallel>], iteration_bounds = array<i64: 1>, scalar_prefetch = 0 : i64, scratch_operands = 0 : i64, tpu.core_type = #tpu.core_type<tc>, window_params = [{transform_indices = @transform_0, window_bounds = array<i64: 16, 32>}, {pipeline_mode = #tpu.pipeline_mode<synchronous>, transform_indices = @transform_1, window_bounds = array<i64: 1, 32>}, {pipeline_mode = #tpu.pipeline_mode<synchronous>, transform_indices = @transform_2, window_bounds = array<i64: 1, 32>}, {transform_indices = @transform_3, window_bounds = array<i64: 16, 32>}]} {
    %c0 = arith.constant 0 : index
    %c0_0 = arith.constant 0 : index
    %0 = vector.load %arg1[%c0, %c0_0] : memref<16x32xf32, #tpu.memory_space<vmem>>, vector<16x32xf32>
    %cst = arith.constant dense<0.000000e+00> : vector<16xf32>
    %1 = vector.multi_reduction <add>, %0, %cst [1] : vector<16x32xf32> to vector<16xf32>
    %2 = vector.shape_cast %1 : vector<16xf32> to vector<16x1xf32>
    %cst_1 = arith.constant 3.200000e+01 : f32
    %3 = vector.broadcast %cst_1 : f32 to vector<16x1xf32>
    %4 = arith.divf %2, %3 : vector<16x1xf32>
    %5 = vector.broadcast %4 : vector<16x1xf32> to vector<16x32xf32>
    %6 = arith.subf %0, %5 : vector<16x32xf32>
    %7 = arith.mulf %6, %6 : vector<16x32xf32>
    %cst_2 = arith.constant dense<0.000000e+00> : vector<16xf32>
    %8 = vector.multi_reduction <add>, %7, %cst_2 [1] : vector<16x32xf32> to vector<16xf32>
    %9 = vector.shape_cast %8 : vector<16xf32> to vector<16x1xf32>
    %cst_3 = arith.constant 3.200000e+01 : f32
    %10 = vector.broadcast %cst_3 : f32 to vector<16x1xf32>
    %11 = arith.divf %9, %10 : vector<16x1xf32>
    %cst_4 = arith.constant 9.99999996E-13 : f32
    %12 = vector.broadcast %cst_4 : f32 to vector<16x1xf32>
    %13 = arith.addf %11, %12 : vector<16x1xf32>
    %14 = math.rsqrt %13 : vector<16x1xf32>
    %15 = vector.broadcast %14 : vector<16x1xf32> to vector<16x32xf32>
    %16 = arith.mulf %6, %15 : vector<16x32xf32>
    %c0_5 = arith.constant 0 : index
    %c0_6 = arith.constant 0 : index
    %17 = vector.load %arg2[%c0_5, %c0_6] : memref<1x32xf32, #tpu.memory_space<vmem>>, vector<1x32xf32>
    %18 = vector.broadcast %17 : vector<1x32xf32> to vector<16x32xf32>
    %19 = arith.mulf %16, %18 : vector<16x32xf32>
    %c0_7 = arith.constant 0 : index
    %c0_8 = arith.constant 0 : index
    %20 = vector.load %arg3[%c0_7, %c0_8] : memref<1x32xf32, #tpu.memory_space<vmem>>, vector<1x32xf32>
    %21 = vector.broadcast %20 : vector<1x32xf32> to vector<16x32xf32>
    %22 = arith.addf %19, %21 : vector<16x32xf32>
    %23 = arith.truncf %22 : vector<16x32xf32> to vector<16x32xbf16>
    %c0_9 = arith.constant 0 : index
    %c0_10 = arith.constant 0 : index
    %24 = vector.load %arg4[%c0_9, %c0_10] : memref<16x32xbf16, #tpu.memory_space<vmem>>, vector<16x32xbf16>
    tpu.vector_store %arg4[%c0_9, %c0_10], %23 {strides = array<i32>} : memref<16x32xbf16, #tpu.memory_space<vmem>>, vector<16x32xbf16>,
    return
  }
  func.func @transform_0(%arg0: i32) -> (i32, i32) {
    %c0_i32 = arith.constant 0 : i32
    %c0_i32_0 = arith.constant 0 : i32
    return %arg0, %c0_i32 : i32, i32
  }
  func.func @transform_1(%arg0: i32) -> (i32, i32) {
    %c0_i32 = arith.constant 0 : i32
    %c0_i32_0 = arith.constant 0 : i32
    %c0_i32_1 = arith.constant 0 : i32
    return %c0_i32, %c0_i32_0 : i32, i32
  }
  func.func @transform_2(%arg0: i32) -> (i32, i32) {
    %c0_i32 = arith.constant 0 : i32
    %c0_i32_0 = arith.constant 0 : i32
    %c0_i32_1 = arith.constant 0 : i32
    return %c0_i32, %c0_i32_0 : i32, i32
  }
  func.func @transform_3(%arg0: i32) -> (i32, i32) {
    %c0_i32 = arith.constant 0 : i32
    %c0_i32_0 = arith.constant 0 : i32
    return %arg0, %c0_i32 : i32, i32
  }
}

</mosaic_0001>

<llo_original>
// kernel: tpu_custom_call.1
$region0: #{tpu_custom_call.1}
  #allocation0 [shape = 'u32[]', space=smem, size = 0x4, offset = 0x4, fixed_abs, tag = 'smem constant byte address 0x4 - core index']
  #allocation1 [shape = 'u32[144,128]{1,0:T(1,128)}', space=vmem, size = 0x12000, scoped, tag = 'internal scratch']
  %s0 = inlined_call_operand.hbm [shape: f32[16,32], index: 0, kind: input, shape index: {}]
  %s1 = inlined_call_operand.vmem [shape: f32[1,32], index: 1, kind: input, shape index: {}]
  %s2 = inlined_call_operand.vmem [shape: f32[1,32], index: 2, kind: input, shape index: {}]
  %s3 = inlined_call_operand.hbm [shape: bf16[16,32], index: 3, kind: output, shape index: {}]
  %s4 = sld [smem:[#allocation0]]
  $region26: #{tpu_custom_call.1} parent=0
    _
  %s6 = ssub.s32 1, %s4
  %s7 = scalar_select 0, %s6, %s4
  $region1: #{tpu_custom_call.1} parent=0
    #allocation2 [shape = 'u8[8192]{0}', space=vmem, size = 0x2000, scoped, tag = 'input window, operand 0, single buffered']
    #allocation3 [shape = 's32[1]{0}', space=sflag, size = 0x4, scoped, tag = 'scoped memory for tpu_custom_call.1']
    #allocation4 [shape = 's32[1]{0}', space=sflag, size = 0x4, scoped, tag = 'scoped memory for tpu_custom_call.1']
    #allocation5 [shape = 'u8[4096]{0}', space=vmem, size = 0x1000, scoped, tag = 'output window, operand 0, single buffered']
    %8 = vsyncpa [#allocation3], 0
    %9 = vsyncpa [#allocation4], 0
    // Predicated region
    $region2: #{tpu_custom_call.1} parent=1 // pred_check
      _
    $region3: #{tpu_custom_call.1} parent=1 // pred_check_branch
      %11 = sbr.rel (0) target = $region5
    $region4: #{tpu_custom_call.1} parent=1 // pred_region
      %s13 = ssub.s32 256, 256
      %14 = vsyncadd [#allocation3], %s13
      %s15 = sshll.u32 [#allocation2], 4
      %s16 = int_to_ptr.vmem [resolvable:$true] %s15
      %21 = dma.hbm_to_vmem [thread:$0]  %s0, 256, %s16, [#allocation3], 128, 128, 8
    $region5: #{tpu_custom_call.1} parent=1 // pred_fallthru
      _
    // Predicated region
    $region6: #{tpu_custom_call.1} parent=1 // pred_check
      _
    $region7: #{tpu_custom_call.1} parent=1 // pred_check_branch
      %23 = sbr.rel (0) target = $region9
    $region8: #{tpu_custom_call.1} parent=1 // pred_region
      _
    $region9: #{tpu_custom_call.1} parent=1 // pred_fallthru
      _
    // Predicated region
    $region10: #{tpu_custom_call.1} parent=1 // pred_check
      _
    $region11: #{tpu_custom_call.1} parent=1 // pred_check_branch
      %25 = sbr.rel (0) target = $region13
    $region12: #{tpu_custom_call.1} parent=1 // pred_region
      _
    $region13: #{tpu_custom_call.1} parent=1 // pred_fallthru
      _
    // Predicated region
    $region14: #{tpu_custom_call.1} parent=1 // pred_check
      _
    $region15: #{tpu_custom_call.1} parent=1 // pred_check_branch
      %27 = sbr.rel (0) target = $region17
    $region16: #{tpu_custom_call.1} parent=1 // pred_region
      %28 = dma.done [#allocation3], 256
    $region17: #{tpu_custom_call.1} parent=1 // pred_fallthru
      _
    %v29 = vld [vmem:[#allocation2] sm:$0xff]
    %v30 = vld [vmem:[#allocation2 + $0x8] sm:$0xff]
    %vm31 = vcmask 261120
    %v32 = vsel %vm31, %v29, 0.0
    %33 = vadd.xlane.f32.xlu0 %v32
    %v34 = vpop.xlane.xlu0 %33
    %v35 = vsel %vm31, %v30, 0.0
    %36 = vadd.xlane.f32.xlu0 %v35
    %v37 = vpop.xlane.xlu0 %36
    %v38 = vrcp.pop 32.0
    %v39 = vmul.f32 %v34, %v38
    %v40 = vmul.f32 %v37, %v38
    %v41 = vsub.f32 %v29, %v39
    %v42 = vsub.f32 %v30, %v40
    %v43 = vmul.f32 %v41, %v41
    %v44 = vmul.f32 %v42, %v42
    %v45 = vsel %vm31, %v43, 0.0
    %46 = vadd.xlane.f32.xlu0 %v45
    %v47 = vpop.xlane.xlu0 %46
    %v48 = vsel %vm31, %v44, 0.0
    %49 = vadd.xlane.f32.xlu0 %v48
    %v50 = vpop.xlane.xlu0 %49
    %v51 = vmul.f32 %v47, %v38
    %v52 = vmul.f32 %v50, %v38
    %v53 = vadd.f32 %v51, 1e-12
    %v54 = vadd.f32 %v52, 1e-12
    %v55 = vrsqrt.pop %v53
    %v56 = vrsqrt.pop %v54
    %v57 = vmul.f32 %v41, %v55
    %v58 = vmul.f32 %v42, %v56
    %v59 = vld [vmem:[%s1] sm:$0x1]
    %v61 = vlaneseq
    %v62 = vshrl.u32 %v61, 7
    %v63 = vsub.s32 0, %v62
    %v64 = vrot.slane %v59, %v63
    %v66 = vmul.f32 %v57, %v64
    %v67 = vmul.f32 %v58, %v64
    %v68 = vld [vmem:[%s2] sm:$0x1]
    %v70 = vlaneseq
    %v71 = vshrl.u32 %v70, 7
    %v72 = vsub.s32 0, %v71
    %v73 = vrot.slane %v68, %v72
    %v75 = vadd.f32 %v66, %v73
    %v76 = vadd.f32 %v67, %v73
    %v77 = vpack.c.bf16 %v76, %v75
    %v79 = vunpack.c.l.b16 %v77
    %v80 = vunpack.c.h.b16 %v77
    %v81 = vpack.c.b16 %v79, %v79
    %v82 = vpack.c.b16 %v80, %v80
    %vm85 = vcmask 257024
    %86 = vst.msk [vmem:[#allocation5] sm:$0xf] %vm85, %v81
    %87 = vst.msk [vmem:[#allocation5 + $0x4] sm:$0xf] %vm85, %v82
    // Predicated region
    $region18: #{tpu_custom_call.1} parent=1 // pred_check
      _
    $region19: #{tpu_custom_call.1} parent=1 // pred_check_branch
      %89 = sbr.rel (0) target = $region21
    $region20: #{tpu_custom_call.1} parent=1 // pred_region
      %s91 = ssub.s32 128, 128
      %92 = vsyncadd [#allocation4], %s91
      %s93 = sshll.u32 [#allocation5], 4
      %s94 = int_to_ptr.vmem [resolvable:$true] %s93
      %99 = dma.vmem_to_hbm [thread:$0]  %s94, 128, %s3, [#allocation4], 64, 64, 4
    $region21: #{tpu_custom_call.1} parent=1 // pred_fallthru
      _
    // Predicated region
    $region22: #{tpu_custom_call.1} parent=1 // pred_check
      _
    $region23: #{tpu_custom_call.1} parent=1 // pred_check_branch
      %101 = sbr.rel (0) target = $region25
    $region24: #{tpu_custom_call.1} parent=1 // pred_region
      %102 = dma.done [#allocation4], 128
    $region25: #{tpu_custom_call.1} parent=1 // pred_fallthru
      _
    %103 = vsyncpa [#allocation3], 1
    %104 = vsyncpa [#allocation4], 1

</llo_original>
